<compile_context>
chip_gen: v7x
topology: tpu7x:2x2x1
jax: 0.10.0
libtpu: 0.0.40
codegen_flags: <defaults>
</compile_context>

<pallas_src>
import functools
import math

import jax
import jax.numpy as jnp
from jax.experimental import pallas as pl
from jax.experimental.pallas import tpu as pltpu


# ------------------------------ Pallas kernel ------------------------------ #

def _gelu_tanh(x):
    # tanh-form GELU: routed through the EUP instead of a long VALU polynomial.
    c = 0.7978845608028654  # sqrt(2/pi)
    return 0.5 * x * (1.0 + jnp.tanh(c * (x + 0.044715 * x * x * x)))


def _conv3x3_s2_kernel(x_ref, w_ref, b_ref, o_ref, *, n_rows_out, n_cols_out,
                       apply_gelu):
    """One batch element: 3x3 stride-2 VALID conv + folded BN (+ GELU).

    x_ref: (1, H, Wg, 2*Cin)   column-pair packed input (Wg = n_cols_out + 1)
    w_ref: (3, 2, 2*Cin, Cout) per-kh [A|B] weight matrices, BN scale folded in
    b_ref: (1, Cout)           folded conv-bias + BN shift (f32)
    o_ref: (1, Ho, Wo, Cout)
    """
    wo = n_cols_out
    cout = o_ref.shape[-1]

    def row_body(j, carry):
        acc = jnp.zeros((wo, cout), jnp.float32)
        for kh in range(3):                        # static unroll: 6 matmuls
            r = 2 * j + kh                         # input row (leading dim)
            xa = x_ref[0, r, 0:wo, :]              # taps kw=0,1 (packed lanes)
            xb = x_ref[0, r, 1:wo + 1, :]          # tap  kw=2 (+1 group shift)
            acc += jnp.dot(xa, w_ref[kh, 0],
                           preferred_element_type=jnp.float32)
            acc += jnp.dot(xb, w_ref[kh, 1],
                           preferred_element_type=jnp.float32)
        acc = acc + b_ref[...]                     # f32 epilogue
        if apply_gelu:
            acc = _gelu_tanh(acc)
        o_ref[0, j] = acc.astype(o_ref.dtype)
        return carry

    jax.lax.fori_loop(0, n_rows_out, row_body, 0)


def conv3x3_bn_act(x_nhwc, w_oihw, conv_bias, gamma, beta, run_mean, run_var,
                   *, eps=1e-5, apply_gelu=False,
                   compute_dtype=jnp.bfloat16, out_dtype=None):
    """3x3 stride-2 VALID conv + eval-mode BatchNorm (+ optional GELU)."""
    B, H, W, Cin = x_nhwc.shape
    Cout = w_oihw.shape[0]
    Ho = (H - 3) // 2 + 1
    Wo = (W - 3) // 2 + 1
    out_dtype = compute_dtype if out_dtype is None else out_dtype

    # --- column-pair packing: free row-major reshape (pad <=1 col if W odd) ---
    Wp = 2 * Wo + 2                       # == W (W even) or W + 1 (W odd)
    if Wp != W:
        x_nhwc = jnp.pad(x_nhwc, ((0, 0), (0, 0), (0, Wp - W), (0, 0)))
    Wg = Wo + 1
    xg = x_nhwc.reshape(B, H, Wg, 2 * Cin).astype(compute_dtype)

    # --- fold conv bias + eval-mode BN into the weights / a single bias row ---
    inv_std = 1.0 / jnp.sqrt(run_var + eps)
    scale = gamma * inv_std                                    # (Cout,)
    bias = ((conv_bias - run_mean) * scale + beta).reshape(1, Cout)
    bias = bias.astype(jnp.float32)

    wk = jnp.transpose(w_oihw, (2, 3, 1, 0)) * scale           # (3,3,Cin,Cout)
    w_a = jnp.concatenate([wk[:, 0], wk[:, 1]], axis=1)        # (3,2Cin,Cout)
    w_b = jnp.concatenate(
        [wk[:, 2], jnp.zeros((3, Cin, Cout), wk.dtype)], axis=1)
    wab = jnp.stack([w_a, w_b], axis=1).astype(compute_dtype)  # (3,2,2Cin,Cout)

    kernel = functools.partial(_conv3x3_s2_kernel, n_rows_out=Ho,
                               n_cols_out=Wo, apply_gelu=apply_gelu)
    return pl.pallas_call(
        kernel,
        out_shape=jax.ShapeDtypeStruct((B, Ho, Wo, Cout), out_dtype),
        grid=(B,),
        in_specs=[
            pl.BlockSpec((1, H, Wg, 2 * Cin), lambda b: (b, 0, 0, 0)),
            pl.BlockSpec((3, 2, 2 * Cin, Cout), lambda b: (0, 0, 0, 0)),
            pl.BlockSpec((1, Cout), lambda b: (0, 0)),
        ],
        out_specs=pl.BlockSpec((1, Ho, Wo, Cout), lambda b: (b, 0, 0, 0)),
        compiler_params=pltpu.CompilerParams(
            dimension_semantics=("parallel",)),
    )(xg, wab, bias)


# --------------------------- module construction --------------------------- #

def channel_plan(stride, embed_size):
    """Replicates ConvPatchEmbedding._get_patch_embedding channel layout."""
    num = int(math.log2(stride))
    outs = [embed_size // (stride // 2)]
    for idx in range(num - 1, 1, -1):
        outs.append(embed_size // 2 ** (idx - 1))
    outs.append(embed_size)
    ins = [3] + outs[:-1]
    return list(zip(ins, outs))


def init_params(key, stride=16, embed_size=32):
    params = []
    for (cin, cout) in channel_plan(stride, embed_size):
        key, kw, kb, kg, kbe, km, kv = jax.random.split(key, 7)
        fan_in = cin * 9
        params.append(dict(
            w=jax.random.normal(kw, (cout, cin, 3, 3), jnp.float32)
              / math.sqrt(fan_in),
            b=0.1 * jax.random.normal(kb, (cout,), jnp.float32),
            gamma=1.0 + 0.1 * jax.random.normal(kg, (cout,), jnp.float32),
            beta=0.1 * jax.random.normal(kbe, (cout,), jnp.float32),
            mean=0.1 * jax.random.normal(km, (cout,), jnp.float32),
            var=0.5 + jax.random.uniform(kv, (cout,), jnp.float32),
        ))
    return params


def conv_patch_embedding(image_nchw, params, compute_dtype=jnp.bfloat16):
    """Forward pass. Returns (tokens (B, Ho*Wo, C), Ho, Wo)."""
    x = jnp.transpose(image_nchw, (0, 2, 3, 1))  # NCHW -> NHWC
    n = len(params)
    for i, p in enumerate(params):
        last = (i == n - 1)
        x = conv3x3_bn_act(x, p["w"], p["b"], p["gamma"], p["beta"],
                           p["mean"], p["var"],
                           apply_gelu=not last,
                           compute_dtype=compute_dtype,
                           out_dtype=jnp.float32 if last else compute_dtype)
    B, Ho, Wo, C = x.shape
    # einops 'b c w h -> b (w h) c' == NHWC reshape (row-major over H then W)
    tokens = x.reshape(B, Ho * Wo, C)
    return tokens, Ho, Wo


# ------------------------------ pure-JAX reference ------------------------- #

def reference_forward(image_nchw, params, eps=1e-5):
    x = image_nchw
    n = len(params)
    for i, p in enumerate(params):
        x = jax.lax.conv_general_dilated(
            x, p["w"], window_strides=(2, 2), padding="VALID",
            dimension_numbers=("NCHW", "OIHW", "NCHW"),
            precision=jax.lax.Precision.HIGHEST)
        x = x + p["b"][None, :, None, None]
        inv = 1.0 / jnp.sqrt(p["var"] + eps)
        x = ((x - p["mean"][None, :, None, None])
             * (p["gamma"] * inv)[None, :, None, None]
             + p["beta"][None, :, None, None])
        if i < n - 1:
            x = jax.nn.gelu(x, approximate=False)
    B, C, H, W = x.shape
    tokens = jnp.transpose(x, (0, 2, 3, 1)).reshape(B, H * W, C)
    return tokens, H, W


# ----------------------------------- main ----------------------------------- #

if __name__ == "__main__":
    key = jax.random.PRNGKey(0)
    k_img, k_par = jax.random.split(key)

    STRIDE = 16          # -> 4 conv layers
    EMBED = 32           # small embed dim; channels: 3 -> 4 -> 8 -> 16 -> 32
    B, H, W = 2, 64, 64  # 64x64 so 4 stride-2 VALID convs leave 3x3 spatial

    image = jax.random.normal(k_img, (B, 3, H, W), jnp.float32)  # NCHW input
    params = init_params(k_par, stride=STRIDE, embed_size=EMBED)

    tokens, ho, wo = conv_patch_embedding(image, params)
    tokens = jax.block_until_ready(tokens)

    ref_tokens, ref_h, ref_w = reference_forward(image, params)
    assert tokens.shape == ref_tokens.shape == (B, ho * wo, EMBED)
    assert (ho, wo) == (ref_h, ref_w)
    # Tolerance accounts for bf16 operand streams (f32 accumulation) and the
    # tanh-form GELU, compounded across 4 conv+BN stages.
    assert jnp.allclose(tokens, ref_tokens, atol=5e-2, rtol=5e-2), (
        float(jnp.max(jnp.abs(tokens - ref_tokens))))

    print("KERNEL_OK")
</pallas_src>

<mosaic_0001>
module attributes {stable_mosaic.version = 11 : i64} {
  func.func @_conv3x3_s2_kernel(%arg0: i32, %arg1: memref<1x64x32x6xbf16, #tpu.memory_space<vmem>>, %arg2: memref<3x2x6x4xbf16, #tpu.memory_space<vmem>>, %arg3: memref<1x4xf32, #tpu.memory_space<vmem>>, %arg4: memref<1x31x31x4xbf16, #tpu.memory_space<vmem>>) attributes {dimension_semantics = [#tpu.dimension_semantics<parallel>], iteration_bounds = array<i64: 2>, scalar_prefetch = 0 : i64, scratch_operands = 0 : i64, tpu.core_type = #tpu.core_type<tc>, window_params = [{transform_indices = @transform_0, window_bounds = array<i64: 1, 64, 32, 6>}, {pipeline_mode = #tpu.pipeline_mode<synchronous>, transform_indices = @transform_1, window_bounds = array<i64: 3, 2, 6, 4>}, {pipeline_mode = #tpu.pipeline_mode<synchronous>, transform_indices = @transform_2, window_bounds = array<i64: 1, 4>}, {transform_indices = @transform_3, window_bounds = array<i64: 1, 31, 31, 4>}]} {
    %c0_i32 = arith.constant 0 : i32
    %c31_i32 = arith.constant 31 : i32
    %0 = arith.addi %c0_i32, %c31_i32 : i32
    %c1_i32 = arith.constant 1 : i32
    scf.for %arg5 = %c0_i32 to %0 step %c1_i32  : i32 {
      %cst = arith.constant 0.000000e+00 : f32
      %1 = vector.broadcast %cst : f32 to vector<31x4xf32>
      %c2_i32 = arith.constant 2 : i32
      %2 = arith.muli %c2_i32, %arg5 : i32
      %c0_i32_1 = arith.constant 0 : i32
      %3 = arith.addi %2, %c0_i32_1 : i32
      %c0 = arith.constant 0 : index
      %4 = arith.index_cast %3 : i32 to index
      %c0_2 = arith.constant 0 : index
      %c0_3 = arith.constant 0 : index
      %5 = vector.load %arg1[%c0, %4, %c0_2, %c0_3] : memref<1x64x32x6xbf16, #tpu.memory_space<vmem>>, vector<1x1x31x6xbf16>
      %6 = vector.shape_cast %5 : vector<1x1x31x6xbf16> to vector<31x6xbf16>
      %c0_4 = arith.constant 0 : index
      %7 = arith.index_cast %3 : i32 to index
      %c1 = arith.constant 1 : index
      %c0_5 = arith.constant 0 : index
      %8 = vector.load %arg1[%c0_4, %7, %c1, %c0_5] : memref<1x64x32x6xbf16, #tpu.memory_space<vmem>>, vector<1x1x31x6xbf16>
      %9 = vector.shape_cast %8 : vector<1x1x31x6xbf16> to vector<31x6xbf16>
      %c0_6 = arith.constant 0 : index
      %c0_7 = arith.constant 0 : index
      %c0_8 = arith.constant 0 : index
      %c0_9 = arith.constant 0 : index
      %10 = vector.load %arg2[%c0_6, %c0_7, %c0_8, %c0_9] : memref<3x2x6x4xbf16, #tpu.memory_space<vmem>>, vector<1x1x6x4xbf16>
      %11 = vector.shape_cast %10 : vector<1x1x6x4xbf16> to vector<6x4xbf16>
      %cst_10 = arith.constant dense<0.000000e+00> : vector<31x4xf32>
      %12 = tpu.matmul %6, %11, %cst_10 {dimension_numbers = #tpu.dot_dimension_numbers<[1], [0], [0], [1], [0, 0, 1, 1], [], []>} : vector<31x6xbf16>, vector<6x4xbf16>, vector<31x4xf32> -> vector<31x4xf32>
      %13 = arith.addf %1, %12 : vector<31x4xf32>
      %c0_11 = arith.constant 0 : index
      %c1_12 = arith.constant 1 : index
      %c0_13 = arith.constant 0 : index
      %c0_14 = arith.constant 0 : index
      %14 = vector.load %arg2[%c0_11, %c1_12, %c0_13, %c0_14] : memref<3x2x6x4xbf16, #tpu.memory_space<vmem>>, vector<1x1x6x4xbf16>
      %15 = vector.shape_cast %14 : vector<1x1x6x4xbf16> to vector<6x4xbf16>
      %cst_15 = arith.constant dense<0.000000e+00> : vector<31x4xf32>
      %16 = tpu.matmul %9, %15, %cst_15 {dimension_numbers = #tpu.dot_dimension_numbers<[1], [0], [0], [1], [0, 0, 1, 1], [], []>} : vector<31x6xbf16>, vector<6x4xbf16>, vector<31x4xf32> -> vector<31x4xf32>
      %17 = arith.addf %13, %16 : vector<31x4xf32>
      %c2_i32_16 = arith.constant 2 : i32
      %18 = arith.muli %c2_i32_16, %arg5 : i32
      %c1_i32_17 = arith.constant 1 : i32
      %19 = arith.addi %18, %c1_i32_17 : i32
      %c0_18 = arith.constant 0 : index
      %20 = arith.index_cast %19 : i32 to index
      %c0_19 = arith.constant 0 : index
      %c0_20 = arith.constant 0 : index
      %21 = vector.load %arg1[%c0_18, %20, %c0_19, %c0_20] : memref<1x64x32x6xbf16, #tpu.memory_space<vmem>>, vector<1x1x31x6xbf16>
      %22 = vector.shape_cast %21 : vector<1x1x31x6xbf16> to vector<31x6xbf16>
      %c0_21 = arith.constant 0 : index
      %23 = arith.index_cast %19 : i32 to index
      %c1_22 = arith.constant 1 : index
      %c0_23 = arith.constant 0 : index
      %24 = vector.load %arg1[%c0_21, %23, %c1_22, %c0_23] : memref<1x64x32x6xbf16, #tpu.memory_space<vmem>>, vector<1x1x31x6xbf16>
      %25 = vector.shape_cast %24 : vector<1x1x31x6xbf16> to vector<31x6xbf16>
      %c1_24 = arith.constant 1 : index
      %c0_25 = arith.constant 0 : index
      %c0_26 = arith.constant 0 : index
      %c0_27 = arith.constant 0 : index
      %26 = vector.load %arg2[%c1_24, %c0_25, %c0_26, %c0_27] : memref<3x2x6x4xbf16, #tpu.memory_space<vmem>>, vector<1x1x6x4xbf16>
      %27 = vector.shape_cast %26 : vector<1x1x6x4xbf16> to vector<6x4xbf16>
      %cst_28 = arith.constant dense<0.000000e+00> : vector<31x4xf32>
      %28 = tpu.matmul %22, %27, %cst_28 {dimension_numbers = #tpu.dot_dimension_numbers<[1], [0], [0], [1], [0, 0, 1, 1], [], []>} : vector<31x6xbf16>, vector<6x4xbf16>, vector<31x4xf32> -> vector<31x4xf32>
      %29 = arith.addf %17, %28 : vector<31x4xf32>
      %c1_29 = arith.constant 1 : index
      %c1_30 = arith.constant 1 : index
      %c0_31 = arith.constant 0 : index
      %c0_32 = arith.constant 0 : index
      %30 = vector.load %arg2[%c1_29, %c1_30, %c0_31, %c0_32] : memref<3x2x6x4xbf16, #tpu.memory_space<vmem>>, vector<1x1x6x4xbf16>
      %31 = vector.shape_cast %30 : vector<1x1x6x4xbf16> to vector<6x4xbf16>
      %cst_33 = arith.constant dense<0.000000e+00> : vector<31x4xf32>
      %32 = tpu.matmul %25, %31, %cst_33 {dimension_numbers = #tpu.dot_dimension_numbers<[1], [0], [0], [1], [0, 0, 1, 1], [], []>} : vector<31x6xbf16>, vector<6x4xbf16>, vector<31x4xf32> -> vector<31x4xf32>
      %33 = arith.addf %29, %32 : vector<31x4xf32>
      %c2_i32_34 = arith.constant 2 : i32
      %34 = arith.muli %c2_i32_34, %arg5 : i32
      %c2_i32_35 = arith.constant 2 : i32
      %35 = arith.addi %34, %c2_i32_35 : i32
      %c0_36 = arith.constant 0 : index
      %36 = arith.index_cast %35 : i32 to index
      %c0_37 = arith.constant 0 : index
      %c0_38 = arith.constant 0 : index
      %37 = vector.load %arg1[%c0_36, %36, %c0_37, %c0_38] : memref<1x64x32x6xbf16, #tpu.memory_space<vmem>>, vector<1x1x31x6xbf16>
      %38 = vector.shape_cast %37 : vector<1x1x31x6xbf16> to vector<31x6xbf16>
      %c0_39 = arith.constant 0 : index
      %39 = arith.index_cast %35 : i32 to index
      %c1_40 = arith.constant 1 : index
      %c0_41 = arith.constant 0 : index
      %40 = vector.load %arg1[%c0_39, %39, %c1_40, %c0_41] : memref<1x64x32x6xbf16, #tpu.memory_space<vmem>>, vector<1x1x31x6xbf16>
      %41 = vector.shape_cast %40 : vector<1x1x31x6xbf16> to vector<31x6xbf16>
      %c2 = arith.constant 2 : index
      %c0_42 = arith.constant 0 : index
      %c0_43 = arith.constant 0 : index
      %c0_44 = arith.constant 0 : index
      %42 = vector.load %arg2[%c2, %c0_42, %c0_43, %c0_44] : memref<3x2x6x4xbf16, #tpu.memory_space<vmem>>, vector<1x1x6x4xbf16>
      %43 = vector.shape_cast %42 : vector<1x1x6x4xbf16> to vector<6x4xbf16>
      %cst_45 = arith.constant dense<0.000000e+00> : vector<31x4xf32>
      %44 = tpu.matmul %38, %43, %cst_45 {dimension_numbers = #tpu.dot_dimension_numbers<[1], [0], [0], [1], [0, 0, 1, 1], [], []>} : vector<31x6xbf16>, vector<6x4xbf16>, vector<31x4xf32> -> vector<31x4xf32>
      %45 = arith.addf %33, %44 : vector<31x4xf32>
      %c2_46 = arith.constant 2 : index
      %c1_47 = arith.constant 1 : index
      %c0_48 = arith.constant 0 : index
      %c0_49 = arith.constant 0 : index
      %46 = vector.load %arg2[%c2_46, %c1_47, %c0_48, %c0_49] : memref<3x2x6x4xbf16, #tpu.memory_space<vmem>>, vector<1x1x6x4xbf16>
      %47 = vector.shape_cast %46 : vector<1x1x6x4xbf16> to vector<6x4xbf16>
      %cst_50 = arith.constant dense<0.000000e+00> : vector<31x4xf32>
      %48 = tpu.matmul %41, %47, %cst_50 {dimension_numbers = #tpu.dot_dimension_numbers<[1], [0], [0], [1], [0, 0, 1, 1], [], []>} : vector<31x6xbf16>, vector<6x4xbf16>, vector<31x4xf32> -> vector<31x4xf32>
      %49 = arith.addf %45, %48 : vector<31x4xf32>
      %c0_51 = arith.constant 0 : index
      %c0_52 = arith.constant 0 : index
      %50 = vector.load %arg3[%c0_51, %c0_52] : memref<1x4xf32, #tpu.memory_space<vmem>>, vector<1x4xf32>
      %51 = vector.broadcast %50 : vector<1x4xf32> to vector<31x4xf32>
      %52 = arith.addf %49, %51 : vector<31x4xf32>
      %cst_53 = arith.constant 5.000000e-01 : f32
      %53 = vector.broadcast %cst_53 : f32 to vector<31x4xf32>
      %54 = arith.mulf %53, %52 : vector<31x4xf32>
      %cst_54 = arith.constant 4.471500e-02 : f32
      %55 = vector.broadcast %cst_54 : f32 to vector<31x4xf32>
      %56 = arith.mulf %55, %52 : vector<31x4xf32>
      %57 = arith.mulf %56, %52 : vector<31x4xf32>
      %58 = arith.mulf %57, %52 : vector<31x4xf32>
      %59 = arith.addf %52, %58 : vector<31x4xf32>
      %cst_55 = arith.constant 0.797884583 : f32
      %60 = vector.broadcast %cst_55 : f32 to vector<31x4xf32>
      %61 = arith.mulf %60, %59 : vector<31x4xf32>
      %62 = math.tanh %61 : vector<31x4xf32>
      %cst_56 = arith.constant 1.000000e+00 : f32
      %63 = vector.broadcast %cst_56 : f32 to vector<31x4xf32>
      %64 = arith.addf %63, %62 : vector<31x4xf32>
      %65 = arith.mulf %54, %64 : vector<31x4xf32>
      %66 = arith.truncf %65 : vector<31x4xf32> to vector<31x4xbf16>
      %c0_57 = arith.constant 0 : index
      %67 = arith.index_cast %arg5 : i32 to index
      %c0_58 = arith.constant 0 : index
      %c0_59 = arith.constant 0 : index
      %68 = vector.load %arg4[%c0_57, %67, %c0_58, %c0_59] : memref<1x31x31x4xbf16, #tpu.memory_space<vmem>>, vector<1x1x31x4xbf16>
      %69 = vector.shape_cast %68 : vector<1x1x31x4xbf16> to vector<31x4xbf16>
      %70 = vector.shape_cast %66 : vector<31x4xbf16> to vector<1x1x31x4xbf16>
      tpu.vector_store %arg4[%c0_57, %67, %c0_58, %c0_59], %70 {strides = array<i32>} : memref<1x31x31x4xbf16, #tpu.memory_space<vmem>>, vector<1x1x31x4xbf16>,
    }
    %c31_i32_0 = arith.constant 31 : i32
    return
  }
  func.func @transform_0(%arg0: i32) -> (i32, i32, i32, i32) {
    %c0_i32 = arith.constant 0 : i32
    %c0_i32_0 = arith.constant 0 : i32
    %c0_i32_1 = arith.constant 0 : i32
    %c0_i32_2 = arith.constant 0 : i32
    return %arg0, %c0_i32, %c0_i32_0, %c0_i32_1 : i32, i32, i32, i32
  }
  func.func @transform_1(%arg0: i32) -> (i32, i32, i32, i32) {
    %c0_i32 = arith.constant 0 : i32
    %c0_i32_0 = arith.constant 0 : i32
    %c0_i32_1 = arith.constant 0 : i32
    %c0_i32_2 = arith.constant 0 : i32
    %c0_i32_3 = arith.constant 0 : i32
    return %c0_i32, %c0_i32_0, %c0_i32_1, %c0_i32_2 : i32, i32, i32, i32
  }
  func.func @transform_2(%arg0: i32) -> (i32, i32) {
    %c0_i32 = arith.constant 0 : i32
    %c0_i32_0 = arith.constant 0 : i32
    %c0_i32_1 = arith.constant 0 : i32
    return %c0_i32, %c0_i32_0 : i32, i32
  }
  func.func @transform_3(%arg0: i32) -> (i32, i32, i32, i32) {
    %c0_i32 = arith.constant 0 : i32
    %c0_i32_0 = arith.constant 0 : i32
    %c0_i32_1 = arith.constant 0 : i32
    %c0_i32_2 = arith.constant 0 : i32
    return %arg0, %c0_i32, %c0_i32_0, %c0_i32_1 : i32, i32, i32, i32
  }
}

</mosaic_0001>

<llo_original>
// kernel: tpu_custom_call.1
$region0: #{tpu_custom_call.1}
  #allocation0 [shape = 'u32[]', space=smem, size = 0x4, offset = 0x4, fixed_abs, tag = 'smem constant byte address 0x4 - core index']
  #allocation1 [shape = 'u32[144,128]{1,0:T(1,128)}', space=vmem, size = 0x12000, scoped, tag = 'internal scratch']
  %s0 = inlined_call_operand.vmem [shape: bf16[2,64,32,6], index: 0, kind: input, shape index: {}]
  %s1 = inlined_call_operand.vmem [shape: bf16[3,2,6,4], index: 1, kind: input, shape index: {}]
  %s2 = inlined_call_operand.vmem [shape: f32[1,4], index: 2, kind: input, shape index: {}]
  %s3 = inlined_call_operand.vmem [shape: bf16[2,31,31,4], index: 3, kind: output, shape index: {}]
  %s4 = sld [smem:[#allocation0]]
  $region52: #{tpu_custom_call.1} parent=0
    _
  %s6 = ssub.s32 1, %s4
  %s7 = scalar_select 0, %s6, %s4
  loop: start=0, step=1, limit=4
  $region2: #{tpu_custom_call.1} parent=0 // loop_pre_header
    _
  $region3: #{tpu_custom_call.1} parent=0 // loop_header
    %s9 = sphi 0, %s13
    %p10 = scmp.ge.s32.totalorder %s9, 4
    %s19 = sphi 0, %s21
    %s22 = sphi 0, %s19
    %s23 = sphi 0, %s22
    %s39 = sphi 0, %s23
    %s43 = sphi 0, %s43
    %s45 = sphi 0, %s43
    %s46 = sphi 0, %s45
    %s60 = sphi 0, %s46
    %s64 = sphi 0, %s64
    %s66 = sphi 0, %s64
    %s67 = sphi 0, %s66
    %s81 = sphi 0, %s67
    %s87 = sphi 0, %s89
    %s90 = sphi 0, %s87
    %s91 = sphi 0, %s90
    %s107 = sphi 0, %s91
  $region4: #{tpu_custom_call.1} parent=0 // loop_header_branch
    %12 = sbr.rel (%p10) target = $region8
  $region5: #{tpu_custom_call.1} parent=0 // loop_body
    %s14 = ssub.s32 %s9, 1
    %s15 = ssub.s32 %s9, 2
    %s16 = sadd.s32 %s9, 1
    %s17 = ssub.s32 %s9, %s16
    %p18 = scmp.eq.s32.totalorder %s17, 0
    %s20 = sadd.s32 %s19, 1
    %s21 = scalar_select %p18, %s19, %s20
    %p24 = pneg %p18
    %p25 = scmp.eq.s32.totalorder %s9, 1
    %p26 = por %p24, %p25
    %p27 = scmp.ne.s32.totalorder %s19, %s22
    %p28 = scmp.eq.s32.totalorder %s9, 0
    %p29 = por %p27, %p28
    %p30 = scmp.ne.s32.totalorder %s19, %s22
    %p31 = scmp.eq.s32.totalorder %s14, 1
    %p32 = por %p30, %p31
    %p33 = scmp.ne.s32.totalorder %s22, %s23
    %p34 = scmp.eq.s32.totalorder %s14, 0
    %p35 = por %p33, %p34
    %p36 = scmp.ne.s32.totalorder %s22, %s23
    %p37 = scmp.eq.s32.totalorder %s15, 1
    %p38 = por %p36, %p37
    %p40 = scmp.ne.s32.totalorder %s23, %s39
    %p41 = scmp.eq.s32.totalorder %s15, 0
    %p42 = por %p40, %p41
    %s44 = sadd.s32 %s43, 1
    %p47 = scmp.eq.s32.totalorder %s9, 1
    %p48 = scmp.ne.s32.totalorder %s43, %s45
    %p49 = scmp.eq.s32.totalorder %s9, 0
    %p50 = por %p48, %p49
    %p51 = scmp.ne.s32.totalorder %s43, %s45
    %p52 = scmp.eq.s32.totalorder %s14, 1
    %p53 = por %p51, %p52
    %p54 = scmp.ne.s32.totalorder %s45, %s46
    %p55 = scmp.eq.s32.totalorder %s14, 0
    %p56 = por %p54, %p55
    %p57 = scmp.ne.s32.totalorder %s45, %s46
    %p58 = scmp.eq.s32.totalorder %s15, 1
    %p59 = por %p57, %p58
    %p61 = scmp.ne.s32.totalorder %s46, %s60
    %p62 = scmp.eq.s32.totalorder %s15, 0
    %p63 = por %p61, %p62
    %s65 = sadd.s32 %s64, 1
    %p68 = scmp.eq.s32.totalorder %s9, 1
    %p69 = scmp.ne.s32.totalorder %s64, %s66
    %p70 = scmp.eq.s32.totalorder %s9, 0
    %p71 = por %p69, %p70
    %p72 = scmp.ne.s32.totalorder %s64, %s66
    %p73 = scmp.eq.s32.totalorder %s14, 1
    %p74 = por %p72, %p73
    %p75 = scmp.ne.s32.totalorder %s66, %s67
    %p76 = scmp.eq.s32.totalorder %s14, 0
    %p77 = por %p75, %p76
    %p78 = scmp.ne.s32.totalorder %s66, %s67
    %p79 = scmp.eq.s32.totalorder %s15, 1
    %p80 = por %p78, %p79
    %p82 = scmp.ne.s32.totalorder %s67, %s81
    %p83 = scmp.eq.s32.totalorder %s15, 0
    %p84 = por %p82, %p83
    %s85 = ssub.s32 %s9, %s16
    %p86 = scmp.eq.s32.totalorder %s85, 0
    %s88 = sadd.s32 %s87, 1
    %s89 = scalar_select %p86, %s87, %s88
    %p92 = pneg %p86
    %p93 = scmp.eq.s32.totalorder %s9, 1
    %p94 = por %p92, %p93
    %p95 = scmp.ne.s32.totalorder %s87, %s90
    %p96 = scmp.eq.s32.totalorder %s9, 0
    %p97 = por %p95, %p96
    %p98 = scmp.ne.s32.totalorder %s87, %s90
    %p99 = scmp.eq.s32.totalorder %s14, 1
    %p100 = por %p98, %p99
    %p101 = scmp.ne.s32.totalorder %s90, %s91
    %p102 = scmp.eq.s32.totalorder %s14, 0
    %p103 = por %p101, %p102
    %p104 = scmp.ne.s32.totalorder %s90, %s91
    %p105 = scmp.eq.s32.totalorder %s15, 1
    %p106 = por %p104, %p105
    %p108 = scmp.ne.s32.totalorder %s91, %s107
    %p109 = scmp.eq.s32.totalorder %s15, 0
    %p110 = por %p108, %p109
    %p111 = scmp.le.s32.totalorder 1, %s9
    %p112 = scmp.lt.s32.totalorder %s9, 3
    %p113 = pnand %p111, %p112
    %p114 = pneg %p113
    // Predicated region
    $region9: #{tpu_custom_call.1} parent=5 // pred_check
      _
    $region10: #{tpu_custom_call.1} parent=5 // pred_check_branch
      %116 = sbr.rel (%p113) target = $region12
    $region11: #{tpu_custom_call.1} parent=5 // pred_region
      %s117 = ssub.s32 %s9, 1
      // Predicated region
      $region13: #{tpu_custom_call.1} parent=11 // pred_check
        %p118 = pneg %p56
      $region14: #{tpu_custom_call.1} parent=11 // pred_check_branch
        %120 = sbr.rel (%p118) target = $region16
      $region15: #{tpu_custom_call.1} parent=11 // pred_region
        _
      $region16: #{tpu_custom_call.1} parent=11 // pred_fallthru
        _
      // Predicated region
      $region17: #{tpu_custom_call.1} parent=11 // pred_check
        %p121 = pneg %p77
      $region18: #{tpu_custom_call.1} parent=11 // pred_check_branch
        %123 = sbr.rel (%p121) target = $region20
      $region19: #{tpu_custom_call.1} parent=11 // pred_region
        _
      $region20: #{tpu_custom_call.1} parent=11 // pred_fallthru
        _
    $region12: #{tpu_custom_call.1} parent=5 // pred_fallthru
      _
    %p124 = scmp.lt.s32.totalorder %s9, 2
    // Predicated region
    $region21: #{tpu_custom_call.1} parent=5 // pred_check
      %p125 = pneg %p124
    $region22: #{tpu_custom_call.1} parent=5 // pred_check_branch
      %127 = sbr.rel (%p125) target = $region24
    $region23: #{tpu_custom_call.1} parent=5 // pred_region
      // Predicated region
      $region25: #{tpu_custom_call.1} parent=23 // pred_check
        %p128 = pneg %p29
      $region26: #{tpu_custom_call.1} parent=23 // pred_check_branch
        %130 = sbr.rel (%p128) target = $region28
      $region27: #{tpu_custom_call.1} parent=23 // pred_region
        %p131 = scmp.lt.s32.totalorder %s9, 1
        %s132 = scalar_select %p131, %s9, 1
        %s133 = smul.addr %s132, 256
        %s134 = smul.addr %s133, 4
        %s135 = scalar_lea.vmem %s0, %s134
      $region28: #{tpu_custom_call.1} parent=23 // pred_fallthru
        _
    $region24: #{tpu_custom_call.1} parent=5 // pred_fallthru
      _
    %p136 = scmp.le.s32.totalorder 1, %s9
    %p137 = scmp.lt.s32.totalorder %s9, 3
    %p138 = pnand %p136, %p137
    %p139 = pneg %p138
    // Predicated region
    $region29: #{tpu_custom_call.1} parent=5 // pred_check
      _
    $region30: #{tpu_custom_call.1} parent=5 // pred_check_branch
      %141 = sbr.rel (%p138) target = $region32
    $region31: #{tpu_custom_call.1} parent=5 // pred_region
      %s142 = ssub.s32 %s9, 1
      %p143 = scmp.lt.s32.totalorder %s14, 1
      %s144 = scalar_select %p143, %s14, 1
      %s145 = smul.addr %s144, 256
      %s146 = smul.addr %s145, 4
      %s147 = scalar_lea.vmem %s0, %s146
      %p148 = pneg %p35
      %p149 = pneg %p32
      %p150 = pneg %p56
      %p151 = pneg %p53
      %p152 = pneg %p77
      %p153 = pneg %p74
      %p154 = pneg %p103
      %p155 = pneg %p100
      %p156 = scmp.lt.s32.totalorder %s14, 1
      %s157 = scalar_select %p156, %s14, 1
      %s158 = smul.addr %s157, 124
      %s159 = smul.addr %s158, 4
      %s160 = scalar_lea.vmem %s3, %s159
      %p161 = scmp.lt.s32.totalorder %s14, 1
      %s162 = scalar_select %p161, %s14, 1
      %s163 = smul.addr %s162, 256
      %s164 = smul.addr %s163, 4
      %s165 = scalar_lea.vmem %s0, %s164
      %p166 = scmp.lt.s32.totalorder %s14, 1
      %s167 = scalar_select %p166, %s14, 1
      %s168 = smul.addr %s167, 124
      %s169 = smul.addr %s168, 4
      %s170 = scalar_lea.vmem %s3, %s169
      loop: start=0, step=1, limit=31
      $region33: #{tpu_custom_call.1} parent=31 // loop_pre_header
        _
      $region34: #{tpu_custom_call.1} parent=31 // loop_header
        %s173 = sphi 0, %s177
        %p174 = scmp.ge.s32.totalorder %s173, 31
      $region35: #{tpu_custom_call.1} parent=31 // loop_header_branch
        %176 = sbr.rel (%p174) target = $region39
      $region36: #{tpu_custom_call.1} parent=31 // loop_body
        %s178 = smul.u32 %s173, 2
        %s179 = smul.u32 %s178, 4
        %s180 = smul.addr %s179, 4
        %s181 = scalar_lea.vmem %s165, %s180
        %v182 = vld [vmem:[%s181] sm:$0xf]
        %v183 = vld [vmem:[%s181 + $0x4] sm:$0xf]
        %v184 = vld [vmem:[%s181 + $0x8] sm:$0xf]
        %v185 = vld [vmem:[%s181 + $0xc] sm:$0xf]
        %v186 = vld [vmem:[%s1] sm:$0x7]
        %s187 = scalar_lea.vmem %s1, 4
        %v188 = vld [vmem:[%s187] sm:$0x7]
        %v193 = vunpack.c.l.b16 %v182
        %v194 = vunpack.c.l.b16 %v183
        %v195 = vunpack.c.l.b16 %v184
        %v196 = vunpack.c.l.b16 %v185
        %v197 = vpack.c.b16 %v194, %v193
        %v198 = vpack.c.b16 %v196, %v195
        %vm199 = vsmask.f32 7424
        %v201 = vshrl.u32 %v197, 16
        %v203 = vshll.u32 %v197, 16
        %v205 = vrot.slane %v203, 1
        %v206 = vor.u32 %v201, %v205
        %v208 = vshll.u32 %v198, 16
        %v210 = vrot.slane %v208, 1
        %v211 = vsel %vm199, %v206, %v210
        %v212 = vshrl.u32 %v198, 16
        %v214 = vor.u32 %v212, %v210
        %vm215 = vcmask 48128
        %v217 = vsel %vm215, %v211, 0
        %v220 = vsel %vm215, %v214, 0
        %vm222 = vcmask 1042432
        %v224 = vsel %vm222, %v188, 0
        %226 = vmatprep.subr.bf16.mxu0 0
        %227 = vmatpush1.bf16.msra.mxu0 %v224
        %228 = vmatprep.subr.bf16.mxu0 0
        %229 = vmatpush1.bf16.msra.mxu0 0
        %230 = vmatprep.subr.bf16.mxu0 0
        %231 = vmatpush1.bf16.msra.mxu0 0
        %232 = vmatprep.subr.bf16.mxu0 0
        %233 = vmatpush1.bf16.msra.mxu0 0
        %234 = vmatprep.subr.bf16.mxu0 0
        %235 = vmatpush1.bf16.msra.mxu0 0
        %236 = vmatprep.subr.bf16.mxu0 0
        %237 = vmatpush1.bf16.msra.mxu0 0
        %238 = vmatprep.subr.bf16.mxu0 0
        %239 = vmatpush1.bf16.msra.mxu0 0
        %240 = vmatprep.subr.bf16.mxu0 0
        %241 = vmatpush1.bf16.msra.mxu0 0
        %242 = vmatprep.subr.bf16.mxu0 0
        %243 = vmatpush1.bf16.msra.mxu0 0
        %244 = vmatprep.subr.bf16.mxu0 0
        %245 = vmatpush1.bf16.msra.mxu0 0
        %246 = vmatprep.subr.bf16.mxu0 0
        %247 = vmatpush1.bf16.msra.mxu0 0
        %248 = vmatprep.subr.bf16.mxu0 0
        %249 = vmatpush1.bf16.msra.mxu0 0
        %250 = vmatprep.subr.bf16.mxu0 0
        %251 = vmatpush1.bf16.msra.mxu0 0
        %252 = vmatprep.subr.bf16.mxu0 0
        %253 = vmatpush1.bf16.msra.mxu0 0
        %254 = vmatprep.subr.bf16.mxu0 0
        %255 = vmatpush1.bf16.msra.mxu0 0
        %256 = vmatprep.subr.bf16.mxu0 0
        %257 = vmatpush1.bf16.msra.mxu0 0
        %258 = vmatprep.mubr.bf16.mxu0 0
        %259 = vmatmul.mubr.bf16.gmra.mrb[0].mxu0 %v217
        %v260 = vpop.f32.mrb[0].mxu0
        %v261 = vadd.f32 0.0, %v260
        %v262 = vpop.f32.mrb[0].mxu0
        %v263 = vpop.f32.mrb[0].mxu0
        %v264 = vadd.f32 0.0, %v263
        %v265 = vpop.f32.mrb[0].mxu0
        %266 = vmatprep.mubr.bf16.mxu0 0
        %267 = vmatmul.mubr.bf16.gmra.mrb[0].mxu0 %v220
        %v268 = vpop.f32.mrb[0].mxu0
        %v269 = vadd.f32 0.0, %v268
        %v270 = vpop.f32.mrb[0].mxu0
        %v271 = vpop.f32.mrb[0].mxu0
        %v272 = vadd.f32 0.0, %v271
        %v273 = vpop.f32.mrb[0].mxu0
        %274 = vdwg.mxu0
        %v275 = vsel %vm215, %v197, 0
        %v277 = vsel %vm215, %v198, 0
        %v280 = vsel %vm222, %v186, 0
        %282 = vmatprep.subr.bf16.mxu0 0
        %283 = vmatpush1.bf16.msra.mxu0 %v280
        %284 = vmatprep.subr.bf16.mxu0 0
        %285 = vmatpush1.bf16.msra.mxu0 0
        %286 = vmatprep.subr.bf16.mxu0 0
        %287 = vmatpush1.bf16.msra.mxu0 0
        %288 = vmatprep.subr.bf16.mxu0 0
        %289 = vmatpush1.bf16.msra.mxu0 0
        %290 = vmatprep.subr.bf16.mxu0 0
        %291 = vmatpush1.bf16.msra.mxu0 0
        %292 = vmatprep.subr.bf16.mxu0 0
        %293 = vmatpush1.bf16.msra.mxu0 0
        %294 = vmatprep.subr.bf16.mxu0 0
        %295 = vmatpush1.bf16.msra.mxu0 0
        %296 = vmatprep.subr.bf16.mxu0 0
        %297 = vmatpush1.bf16.msra.mxu0 0
        %298 = vmatprep.subr.bf16.mxu0 0
        %299 = vmatpush1.bf16.msra.mxu0 0
        %300 = vmatprep.subr.bf16.mxu0 0
        %301 = vmatpush1.bf16.msra.mxu0 0
        %302 = vmatprep.subr.bf16.mxu0 0
        %303 = vmatpush1.bf16.msra.mxu0 0
        %304 = vmatprep.subr.bf16.mxu0 0
        %305 = vmatpush1.bf16.msra.mxu0 0
        %306 = vmatprep.subr.bf16.mxu0 0
        %307 = vmatpush1.bf16.msra.mxu0 0
        %308 = vmatprep.subr.bf16.mxu0 0
        %309 = vmatpush1.bf16.msra.mxu0 0
        %310 = vmatprep.subr.bf16.mxu0 0
        %311 = vmatpush1.bf16.msra.mxu0 0
        %312 = vmatprep.subr.bf16.mxu0 0
        %313 = vmatpush1.bf16.msra.mxu0 0
        %314 = vmatprep.mubr.bf16.mxu0 0
        %315 = vmatmul.mubr.bf16.gmra.mrb[0].mxu0 %v275
        %v316 = vpop.f32.mrb[0].mxu0
        %v317 = vadd.f32 %v261, %v316
        %v318 = vpop.f32.mrb[0].mxu0
        %v319 = vpop.f32.mrb[0].mxu0
        %v320 = vadd.f32 %v264, %v319
        %v321 = vpop.f32.mrb[0].mxu0
        %322 = vmatprep.mubr.bf16.mxu0 0
        %323 = vmatmul.mubr.bf16.gmra.mrb[0].mxu0 %v277
        %v324 = vpop.f32.mrb[0].mxu0
        %v325 = vadd.f32 %v269, %v324
        %v326 = vpop.f32.mrb[0].mxu0
        %v327 = vpop.f32.mrb[0].mxu0
        %v328 = vadd.f32 %v272, %v327
        %v329 = vpop.f32.mrb[0].mxu0
        %330 = vdwg.mxu0
        %s331 = sadd.s32 %s178, 1
        %s332 = smul.u32 %s331, 4
        %s333 = smul.addr %s332, 4
        %s334 = scalar_lea.vmem %s165, %s333
        %v335 = vld [vmem:[%s334] sm:$0xf]
        %v336 = vld [vmem:[%s334 + $0x4] sm:$0xf]
        %v337 = vld [vmem:[%s334 + $0x8] sm:$0xf]
        %v338 = vld [vmem:[%s334 + $0xc] sm:$0xf]
        %s339 = scalar_lea.vmem %s1, 8
        %v340 = vld [vmem:[%s339] sm:$0x7]
        %v345 = vunpack.c.l.b16 %v335
        %v346 = vunpack.c.l.b16 %v336
        %v347 = vunpack.c.l.b16 %v337
        %v348 = vunpack.c.l.b16 %v338
        %v349 = vpack.c.b16 %v346, %v345
        %v350 = vpack.c.b16 %v348, %v347
        %v352 = vsel %vm215, %v349, 0
        %v355 = vsel %vm215, %v350, 0
        %v358 = vsel %vm222, %v340, 0
        %360 = vmatprep.subr.bf16.mxu0 0
        %361 = vmatpush1.bf16.msra.mxu0 %v358
        %362 = vmatprep.subr.bf16.mxu0 0
        %363 = vmatpush1.bf16.msra.mxu0 0
        %364 = vmatprep.subr.bf16.mxu0 0
        %365 = vmatpush1.bf16.msra.mxu0 0
        %366 = vmatprep.subr.bf16.mxu0 0
        %367 = vmatpush1.bf16.msra.mxu0 0
        %368 = vmatprep.subr.bf16.mxu0 0
        %369 = vmatpush1.bf16.msra.mxu0 0
        %370 = vmatprep.subr.bf16.mxu0 0
        %371 = vmatpush1.bf16.msra.mxu0 0
        %372 = vmatprep.subr.bf16.mxu0 0
        %373 = vmatpush1.bf16.msra.mxu0 0
        %374 = vmatprep.subr.bf16.mxu0 0
        %375 = vmatpush1.bf16.msra.mxu0 0
        %376 = vmatprep.subr.bf16.mxu0 0
        %377 = vmatpush1.bf16.msra.mxu0 0
        %378 = vmatprep.subr.bf16.mxu0 0
        %379 = vmatpush1.bf16.msra.mxu0 0
        %380 = vmatprep.subr.bf16.mxu0 0
        %381 = vmatpush1.bf16.msra.mxu0 0
        %382 = vmatprep.subr.bf16.mxu0 0
        %383 = vmatpush1.bf16.msra.mxu0 0
        %384 = vmatprep.subr.bf16.mxu0 0
        %385 = vmatpush1.bf16.msra.mxu0 0
        %386 = vmatprep.subr.bf16.mxu0 0
        %387 = vmatpush1.bf16.msra.mxu0 0
        %388 = vmatprep.subr.bf16.mxu0 0
        %389 = vmatpush1.bf16.msra.mxu0 0
        %390 = vmatprep.subr.bf16.mxu0 0
        %391 = vmatpush1.bf16.msra.mxu0 0
        %392 = vmatprep.mubr.bf16.mxu0 0
        %393 = vmatmul.mubr.bf16.gmra.mrb[0].mxu0 %v352
        %v394 = vpop.f32.mrb[0].mxu0
        %v395 = vadd.f32 0.0, %v394
        %v396 = vpop.f32.mrb[0].mxu0
        %v397 = vpop.f32.mrb[0].mxu0
        %v398 = vadd.f32 0.0, %v397
        %v399 = vpop.f32.mrb[0].mxu0
        %400 = vmatprep.mubr.bf16.mxu0 0
        %401 = vmatmul.mubr.bf16.gmra.mrb[0].mxu0 %v355
        %v402 = vpop.f32.mrb[0].mxu0
        %v403 = vadd.f32 0.0, %v402
        %v404 = vpop.f32.mrb[0].mxu0
        %v405 = vpop.f32.mrb[0].mxu0
        %v406 = vadd.f32 0.0, %v405
        %v407 = vpop.f32.mrb[0].mxu0
        %408 = vdwg.mxu0
        %v409 = vadd.f32 %v317, %v395
        %v410 = vadd.f32 %v320, %v398
        %v411 = vadd.f32 %v325, %v403
        %v412 = vadd.f32 %v328, %v406
        %s413 = scalar_lea.vmem %s1, 12
        %v414 = vld [vmem:[%s413] sm:$0x7]
        %v415 = vshrl.u32 %v349, 16
        %v417 = vshll.u32 %v349, 16
        %v419 = vrot.slane %v417, 1
        %v420 = vor.u32 %v415, %v419
        %v421 = vshll.u32 %v350, 16
        %v423 = vrot.slane %v421, 1
        %v424 = vsel %vm199, %v420, %v423
        %v425 = vshrl.u32 %v350, 16
        %v427 = vor.u32 %v425, %v423
        %v429 = vsel %vm215, %v424, 0
        %v432 = vsel %vm215, %v427, 0
        %v435 = vsel %vm222, %v414, 0
        %437 = vmatprep.subr.bf16.mxu0 0
        %438 = vmatpush1.bf16.msra.mxu0 %v435
        %439 = vmatprep.subr.bf16.mxu0 0
        %440 = vmatpush1.bf16.msra.mxu0 0
        %441 = vmatprep.subr.bf16.mxu0 0
        %442 = vmatpush1.bf16.msra.mxu0 0
        %443 = vmatprep.subr.bf16.mxu0 0
        %444 = vmatpush1.bf16.msra.mxu0 0
        %445 = vmatprep.subr.bf16.mxu0 0
        %446 = vmatpush1.bf16.msra.mxu0 0
        %447 = vmatprep.subr.bf16.mxu0 0
        %448 = vmatpush1.bf16.msra.mxu0 0
        %449 = vmatprep.subr.bf16.mxu0 0
        %450 = vmatpush1.bf16.msra.mxu0 0
        %451 = vmatprep.subr.bf16.mxu0 0
        %452 = vmatpush1.bf16.msra.mxu0 0
        %453 = vmatprep.subr.bf16.mxu0 0
        %454 = vmatpush1.bf16.msra.mxu0 0
        %455 = vmatprep.subr.bf16.mxu0 0
        %456 = vmatpush1.bf16.msra.mxu0 0
        %457 = vmatprep.subr.bf16.mxu0 0
        %458 = vmatpush1.bf16.msra.mxu0 0
        %459 = vmatprep.subr.bf16.mxu0 0
        %460 = vmatpush1.bf16.msra.mxu0 0
        %461 = vmatprep.subr.bf16.mxu0 0
        %462 = vmatpush1.bf16.msra.mxu0 0
        %463 = vmatprep.subr.bf16.mxu0 0
        %464 = vmatpush1.bf16.msra.mxu0 0
        %465 = vmatprep.subr.bf16.mxu0 0
        %466 = vmatpush1.bf16.msra.mxu0 0
        %467 = vmatprep.subr.bf16.mxu0 0
        %468 = vmatpush1.bf16.msra.mxu0 0
        %469 = vmatprep.mubr.bf16.mxu0 0
        %470 = vmatmul.mubr.bf16.gmra.mrb[0].mxu0 %v429
        %v471 = vpop.f32.mrb[0].mxu0
        %v472 = vadd.f32 0.0, %v471
        %v473 = vpop.f32.mrb[0].mxu0
        %v474 = vpop.f32.mrb[0].mxu0
        %v475 = vadd.f32 0.0, %v474
        %v476 = vpop.f32.mrb[0].mxu0
        %477 = vmatprep.mubr.bf16.mxu0 0
        %478 = vmatmul.mubr.bf16.gmra.mrb[0].mxu0 %v432
        %v479 = vpop.f32.mrb[0].mxu0
        %v480 = vadd.f32 0.0, %v479
        %v481 = vpop.f32.mrb[0].mxu0
        %v482 = vpop.f32.mrb[0].mxu0
        %v483 = vadd.f32 0.0, %v482
        %v484 = vpop.f32.mrb[0].mxu0
        %485 = vdwg.mxu0
        %v486 = vadd.f32 %v409, %v472
        %v487 = vadd.f32 %v410, %v475
        %v488 = vadd.f32 %v411, %v480
        %v489 = vadd.f32 %v412, %v483
        %s490 = sadd.s32 %s178, 2
        %s491 = smul.u32 %s490, 4
        %s492 = smul.addr %s491, 4
        %s493 = scalar_lea.vmem %s165, %s492
        %v494 = vld [vmem:[%s493] sm:$0xf]
        %v495 = vld [vmem:[%s493 + $0x4] sm:$0xf]
        %v496 = vld [vmem:[%s493 + $0x8] sm:$0xf]
        %v497 = vld [vmem:[%s493 + $0xc] sm:$0xf]
        %s498 = scalar_lea.vmem %s1, 16
        %v499 = vld [vmem:[%s498] sm:$0x7]
        %v504 = vunpack.c.l.b16 %v494
        %v505 = vunpack.c.l.b16 %v495
        %v506 = vunpack.c.l.b16 %v496
        %v507 = vunpack.c.l.b16 %v497
        %v508 = vpack.c.b16 %v505, %v504
        %v509 = vpack.c.b16 %v507, %v506
        %v511 = vsel %vm215, %v508, 0
        %v514 = vsel %vm215, %v509, 0
        %v517 = vsel %vm222, %v499, 0
        %519 = vmatprep.subr.bf16.mxu0 0
        %520 = vmatpush1.bf16.msra.mxu0 %v517
        %521 = vmatprep.subr.bf16.mxu0 0
        %522 = vmatpush1.bf16.msra.mxu0 0
        %523 = vmatprep.subr.bf16.mxu0 0
        %524 = vmatpush1.bf16.msra.mxu0 0
        %525 = vmatprep.subr.bf16.mxu0 0
        %526 = vmatpush1.bf16.msra.mxu0 0
        %527 = vmatprep.subr.bf16.mxu0 0
        %528 = vmatpush1.bf16.msra.mxu0 0
        %529 = vmatprep.subr.bf16.mxu0 0
        %530 = vmatpush1.bf16.msra.mxu0 0
        %531 = vmatprep.subr.bf16.mxu0 0
        %532 = vmatpush1.bf16.msra.mxu0 0
        %533 = vmatprep.subr.bf16.mxu0 0
        %534 = vmatpush1.bf16.msra.mxu0 0
        %535 = vmatprep.subr.bf16.mxu0 0
        %536 = vmatpush1.bf16.msra.mxu0 0
        %537 = vmatprep.subr.bf16.mxu0 0
        %538 = vmatpush1.bf16.msra.mxu0 0
        %539 = vmatprep.subr.bf16.mxu0 0
        %540 = vmatpush1.bf16.msra.mxu0 0
        %541 = vmatprep.subr.bf16.mxu0 0
        %542 = vmatpush1.bf16.msra.mxu0 0
        %543 = vmatprep.subr.bf16.mxu0 0
        %544 = vmatpush1.bf16.msra.mxu0 0
        %545 = vmatprep.subr.bf16.mxu0 0
        %546 = vmatpush1.bf16.msra.mxu0 0
        %547 = vmatprep.subr.bf16.mxu0 0
        %548 = vmatpush1.bf16.msra.mxu0 0
        %549 = vmatprep.subr.bf16.mxu0 0
        %550 = vmatpush1.bf16.msra.mxu0 0
        %551 = vmatprep.mubr.bf16.mxu0 0
        %552 = vmatmul.mubr.bf16.gmra.mrb[0].mxu0 %v511
        %v553 = vpop.f32.mrb[0].mxu0
        %v554 = vadd.f32 0.0, %v553
        %v555 = vpop.f32.mrb[0].mxu0
        %v556 = vpop.f32.mrb[0].mxu0
        %v557 = vadd.f32 0.0, %v556
        %v558 = vpop.f32.mrb[0].mxu0
        %559 = vmatprep.mubr.bf16.mxu0 0
        %560 = vmatmul.mubr.bf16.gmra.mrb[0].mxu0 %v514
        %v561 = vpop.f32.mrb[0].mxu0
        %v562 = vadd.f32 0.0, %v561
        %v563 = vpop.f32.mrb[0].mxu0
        %v564 = vpop.f32.mrb[0].mxu0
        %v565 = vadd.f32 0.0, %v564
        %v566 = vpop.f32.mrb[0].mxu0
        %567 = vdwg.mxu0
        %v568 = vadd.f32 %v486, %v554
        %v569 = vadd.f32 %v487, %v557
        %v570 = vadd.f32 %v488, %v562
        %v571 = vadd.f32 %v489, %v565
        %s572 = scalar_lea.vmem %s1, 20
        %v573 = vld [vmem:[%s572] sm:$0x7]
        %v574 = vshrl.u32 %v508, 16
        %v576 = vshll.u32 %v508, 16
        %v578 = vrot.slane %v576, 1
        %v579 = vor.u32 %v574, %v578
        %v580 = vshll.u32 %v509, 16
        %v582 = vrot.slane %v580, 1
        %v583 = vsel %vm199, %v579, %v582
        %v584 = vshrl.u32 %v509, 16
        %v586 = vor.u32 %v584, %v582
        %v588 = vsel %vm215, %v583, 0
        %v591 = vsel %vm215, %v586, 0
        %v594 = vsel %vm222, %v573, 0
        %596 = vmatprep.subr.bf16.mxu0 0
        %597 = vmatpush1.bf16.msra.mxu0 %v594
        %598 = vmatprep.subr.bf16.mxu0 0
        %599 = vmatpush1.bf16.msra.mxu0 0
        %600 = vmatprep.subr.bf16.mxu0 0
        %601 = vmatpush1.bf16.msra.mxu0 0
        %602 = vmatprep.subr.bf16.mxu0 0
        %603 = vmatpush1.bf16.msra.mxu0 0
        %604 = vmatprep.subr.bf16.mxu0 0
        %605 = vmatpush1.bf16.msra.mxu0 0
        %606 = vmatprep.subr.bf16.mxu0 0
        %607 = vmatpush1.bf16.msra.mxu0 0
        %608 = vmatprep.subr.bf16.mxu0 0
        %609 = vmatpush1.bf16.msra.mxu0 0
        %610 = vmatprep.subr.bf16.mxu0 0
        %611 = vmatpush1.bf16.msra.mxu0 0
        %612 = vmatprep.subr.bf16.mxu0 0
        %613 = vmatpush1.bf16.msra.mxu0 0
        %614 = vmatprep.subr.bf16.mxu0 0
        %615 = vmatpush1.bf16.msra.mxu0 0
        %616 = vmatprep.subr.bf16.mxu0 0
        %617 = vmatpush1.bf16.msra.mxu0 0
        %618 = vmatprep.subr.bf16.mxu0 0
        %619 = vmatpush1.bf16.msra.mxu0 0
        %620 = vmatprep.subr.bf16.mxu0 0
        %621 = vmatpush1.bf16.msra.mxu0 0
        %622 = vmatprep.subr.bf16.mxu0 0
        %623 = vmatpush1.bf16.msra.mxu0 0
        %624 = vmatprep.subr.bf16.mxu0 0
        %625 = vmatpush1.bf16.msra.mxu0 0
        %626 = vmatprep.subr.bf16.mxu0 0
        %627 = vmatpush1.bf16.msra.mxu0 0
        %628 = vmatprep.mubr.bf16.mxu0 0
        %629 = vmatmul.mubr.bf16.gmra.mrb[0].mxu0 %v588
        %v630 = vpop.f32.mrb[0].mxu0
        %v631 = vadd.f32 0.0, %v630
        %v632 = vpop.f32.mrb[0].mxu0
        %v633 = vpop.f32.mrb[0].mxu0
        %v634 = vadd.f32 0.0, %v633
        %v635 = vpop.f32.mrb[0].mxu0
        %636 = vmatprep.mubr.bf16.mxu0 0
        %637 = vmatmul.mubr.bf16.gmra.mrb[0].mxu0 %v591
        %v638 = vpop.f32.mrb[0].mxu0
        %v639 = vadd.f32 0.0, %v638
        %v640 = vpop.f32.mrb[0].mxu0
        %v641 = vpop.f32.mrb[0].mxu0
        %v642 = vadd.f32 0.0, %v641
        %v643 = vpop.f32.mrb[0].mxu0
        %644 = vdwg.mxu0
        %v645 = vadd.f32 %v568, %v631
        %v646 = vadd.f32 %v569, %v634
        %v647 = vadd.f32 %v570, %v639
        %v648 = vadd.f32 %v571, %v642
        %v649 = vld [vmem:[%s2] sm:$0x1]
        %v651 = vlaneseq
        %v652 = vshrl.u32 %v651, 7
        %v653 = vsub.s32 0, %v652
        %v654 = vrot.slane %v649, %v653
        %v656 = vadd.f32 %v645, %v654
        %v657 = vadd.f32 %v646, %v654
        %v658 = vadd.f32 %v647, %v654
        %v659 = vadd.f32 %v648, %v654
        %v660 = vmul.f32 %v656, 0.5
        %v661 = vmul.f32 %v657, 0.5
        %v662 = vmul.f32 %v658, 0.5
        %v663 = vmul.f32 %v659, 0.5
        %v664 = vmul.f32 %v656, 0.044715
        %v665 = vmul.f32 %v657, 0.044715
        %v666 = vmul.f32 %v658, 0.044715
        %v667 = vmul.f32 %v659, 0.044715
        %v668 = vmul.f32 %v664, %v656
        %v669 = vmul.f32 %v665, %v657
        %v670 = vmul.f32 %v666, %v658
        %v671 = vmul.f32 %v667, %v659
        %v672 = vmul.f32 %v668, %v656
        %v673 = vmul.f32 %v669, %v657
        %v674 = vmul.f32 %v670, %v658
        %v675 = vmul.f32 %v671, %v659
        %v676 = vadd.f32 %v656, %v672
        %v677 = vadd.f32 %v657, %v673
        %v678 = vadd.f32 %v658, %v674
        %v679 = vadd.f32 %v659, %v675
        %v680 = vmul.f32 %v676, 0.7978846
        %v681 = vmul.f32 %v677, 0.7978846
        %v682 = vmul.f32 %v678, 0.7978846
        %v683 = vmul.f32 %v679, 0.7978846
        %v684 = vtanh.pop %v680
        %v685 = vtanh.pop %v681
        %v686 = vtanh.pop %v682
        %v687 = vtanh.pop %v683
        %v688 = vadd.f32 %v684, 1.0
        %v689 = vadd.f32 %v685, 1.0
        %v690 = vadd.f32 %v686, 1.0
        %v691 = vadd.f32 %v687, 1.0
        %v692 = vmul.f32 %v660, %v688
        %v693 = vmul.f32 %v661, %v689
        %v694 = vmul.f32 %v662, %v690
        %v695 = vmul.f32 %v663, %v691
        %v696 = vpack.c.bf16 %v693, %v692
        %v697 = vpack.c.bf16 %v695, %v694
        %v700 = vunpack.c.l.b16 %v696
        %v701 = vunpack.c.h.b16 %v696
        %v702 = vunpack.c.l.b16 %v697
        %v703 = vunpack.c.h.b16 %v697
        %v704 = vpack.c.b16 %v700, %v700
        %v705 = vpack.c.b16 %v701, %v701
        %v706 = vpack.c.b16 %v702, %v702
        %v707 = vpack.c.b16 %v703, %v703
        %s712 = smul.u32 %s173, 4
        %s713 = smul.addr %s712, 4
        %s714 = scalar_lea.vmem %s170, %s713
        %vm715 = vcmask 27648
        %716 = vst.msk [vmem:[%s714] sm:$0xf] %vm715, %v704
        %717 = vst.msk [vmem:[%s714 + $0x4] sm:$0xf] %vm715, %v705
        %718 = vst.msk [vmem:[%s714 + $0x8] sm:$0xf] %vm715, %v706
        %vm719 = vcmask 27648
        %vm720 = vsmask.f32 3328
        %vm721 = vmand %vm719, %vm720
        %v722 = vld [vmem:[%s714 + $0xc] sm:$0xf]
        %v723 = vsel %vm721, %v707, %v722
        %724 = vst [vmem:[%s714 + $0xc] sm:$0xf] %v723
      $region37: #{tpu_custom_call.1} parent=31 // loop_footer
        %s177 = sadd.s32 1, %s173
      $region38: #{tpu_custom_call.1} parent=31 // loop_footer_branch
        %172 = sbr.rel target = $region34
      $region39: #{tpu_custom_call.1} parent=31 // loop_exit
        _
      %p725 = scmp.lt.s32.totalorder %s14, 1
      %s726 = scalar_select %p725, %s14, 1
      %s727 = smul.addr %s726, 124
      %s728 = smul.addr %s727, 4
      %s729 = scalar_lea.vmem %s3, %s728
      // Predicated region
      $region40: #{tpu_custom_call.1} parent=31 // pred_check
        %p730 = pneg %p100
      $region41: #{tpu_custom_call.1} parent=31 // pred_check_branch
        %732 = sbr.rel (%p730) target = $region43
      $region42: #{tpu_custom_call.1} parent=31 // pred_region
        _
      $region43: #{tpu_custom_call.1} parent=31 // pred_fallthru
        _
    $region32: #{tpu_custom_call.1} parent=5 // pred_fallthru
      _
    %p733 = scmp.le.s32.totalorder 2, %s9
    // Predicated region
    $region44: #{tpu_custom_call.1} parent=5 // pred_check
      %p734 = pneg %p733
    $region45: #{tpu_custom_call.1} parent=5 // pred_check_branch
      %736 = sbr.rel (%p734) target = $region47
    $region46: #{tpu_custom_call.1} parent=5 // pred_region
      %s737 = ssub.s32 %s9, 2
      // Predicated region
      $region48: #{tpu_custom_call.1} parent=46 // pred_check
        %p738 = pneg %p106
      $region49: #{tpu_custom_call.1} parent=46 // pred_check_branch
        %740 = sbr.rel (%p738) target = $region51
      $region50: #{tpu_custom_call.1} parent=46 // pred_region
        %p741 = scmp.lt.s32.totalorder %s15, 1
        %s742 = scalar_select %p741, %s15, 1
        %s743 = smul.addr %s742, 124
        %s744 = smul.addr %s743, 4
        %s745 = scalar_lea.vmem %s3, %s744
      $region51: #{tpu_custom_call.1} parent=46 // pred_fallthru
        _
    $region47: #{tpu_custom_call.1} parent=5 // pred_fallthru
      _
  $region6: #{tpu_custom_call.1} parent=0 // loop_footer
    %s13 = sadd.s32 1, %s9
  $region7: #{tpu_custom_call.1} parent=0 // loop_footer_branch
    %8 = sbr.rel target = $region3
  $region8: #{tpu_custom_call.1} parent=0 // loop_exit
    _

</llo_original>
